<compile_context>
chip_gen: v7x
topology: tpu7x:2x2x1
jax: 0.10.0
libtpu: 0.0.40
codegen_flags: <defaults>
</compile_context>

<pallas_src>
import functools

import jax
import jax.numpy as jnp
from jax.experimental import pallas as pl
from jax.experimental.pallas import tpu as pltpu

EPS = 1e-5
LANE = 128
ROW_ALIGN = 16                      # bf16 packs two rows per sublane
VMEM_LIMIT = 32 * 1024 * 1024       # safe headroom on v7x (64 MiB/TC physical)


def _round_up(x, m):
    return ((x + m - 1) // m) * m


def _pad2d(x, rows, cols):
    return jnp.pad(x, ((0, rows - x.shape[0]), (0, cols - x.shape[1])))


def _col_tile(fp, max_tc=512):
    """Largest multiple-of-128 column tile <= max_tc that divides fp."""
    tc = min(fp, max_tc)
    while fp % tc:
        tc -= LANE
    return tc


def _accum_stats(stats_ref, z_f32, *, n_valid, tile_rows, need_mask):
    """stats_ref: (2, TC) block.  Row 0 += sum, row 1 += sumsq, one add."""
    def add(zm):
        s = jnp.sum(zm, axis=0, keepdims=True)
        ss = jnp.sum(zm * zm, axis=0, keepdims=True)
        stats_ref[...] += jnp.concatenate([s, ss], axis=0)

    if not need_mask:               # static: no padding rows at all
        add(z_f32)
        return

    i = pl.program_id(1)
    last = pl.num_programs(1) - 1

    @pl.when(i < last)              # interior tiles: plain unmasked sums
    def _():
        add(z_f32)

    @pl.when(i == last)             # only the last tile can hold padded rows
    def _():
        row = i * tile_rows + jax.lax.broadcasted_iota(jnp.int32, z_f32.shape, 0)
        add(jnp.where(row < n_valid, z_f32, 0.0))


# ---------------------------------------------------------------------------
# Pass 1:  z1 = h @ W1 + b1   (bf16 MXU, f32 accumulate; z1 stored bf16)
#          + per-feature sum / sumsq for BN1 (global batch stats).
# ---------------------------------------------------------------------------
def _linear_stats_kernel(x_ref, w_ref, b_ref, z_ref, stats_ref, *,
                         n_valid, tile_rows, need_mask):
    @pl.when(pl.program_id(1) == 0)
    def _():
        stats_ref[...] = jnp.zeros_like(stats_ref)

    z = jnp.dot(x_ref[...], w_ref[...],
                preferred_element_type=jnp.float32) + b_ref[...]
    z_bf = z.astype(z_ref.dtype)
    z_ref[...] = z_bf
    # Stats from the stored (bf16-rounded) values keep BN self-consistent.
    _accum_stats(stats_ref, z_bf.astype(jnp.float32),
                 n_valid=n_valid, tile_rows=tile_rows, need_mask=need_mask)


# ---------------------------------------------------------------------------
# Pass 2:  h1 = relu(BN1(z1)) ; z2 = h1 @ W2 + b2   (z2 stored bf16)
#          + per-feature sum / sumsq for BN2.
# ---------------------------------------------------------------------------
def _bn_relu_linear_stats_kernel(z1_ref, st1_ref, g1_ref, be1_ref,
                                 w2_ref, b2_ref, z2_ref, st2_ref, *,
                                 n_valid, tile_rows, need_mask):
    @pl.when(pl.program_id(1) == 0)
    def _():
        st2_ref[...] = jnp.zeros_like(st2_ref)

    inv_n = jnp.float32(1.0 / n_valid)
    st1 = st1_ref[...]
    mu = st1[0:1, :] * inv_n
    var = jnp.maximum(st1[1:2, :] * inv_n - mu * mu, 0.0)
    scale = jax.lax.rsqrt(var + EPS) * g1_ref[...]
    shift = be1_ref[...] - mu * scale

    z1 = z1_ref[...].astype(jnp.float32)
    h1 = jnp.maximum(z1 * scale + shift, 0.0)

    z2 = jnp.dot(h1.astype(w2_ref.dtype), w2_ref[...],
                 preferred_element_type=jnp.float32) + b2_ref[...]
    z2_bf = z2.astype(z2_ref.dtype)
    z2_ref[...] = z2_bf
    _accum_stats(st2_ref, z2_bf.astype(jnp.float32),
                 n_valid=n_valid, tile_rows=tile_rows, need_mask=need_mask)


# ---------------------------------------------------------------------------
# Pass 3:  y = relu(BN2(z2))   (ApplyNodeFunc's own BN + ReLU)
# ---------------------------------------------------------------------------
def _bn_relu_kernel(z2_ref, st2_ref, g2_ref, be2_ref, o_ref, *, n_valid):
    inv_n = jnp.float32(1.0 / n_valid)
    st2 = st2_ref[...]
    mu = st2[0:1, :] * inv_n
    var = jnp.maximum(st2[1:2, :] * inv_n - mu * mu, 0.0)
    scale = jax.lax.rsqrt(var + EPS) * g2_ref[...]
    shift = be2_ref[...] - mu * scale
    y = z2_ref[...].astype(jnp.float32) * scale + shift
    o_ref[...] = jnp.maximum(y, 0.0).astype(o_ref.dtype)


def apply_node_func(h, params, *, tile_rows=4096):
    """h: (N, input_dim) float32 node features."""
    w1, b1, g1, be1, w2, b2, g2, be2 = params
    N, in_dim = h.shape
    hid_dim = w1.shape[1]
    out_dim = w2.shape[1]

    hid_p = _round_up(hid_dim, LANE)
    out_p = _round_up(out_dim, LANE)
    tr = min(_round_up(tile_rows, ROW_ALIGN), _round_up(N, ROW_ALIGN))
    n_pad = _round_up(N, tr)
    n_rows = n_pad // tr
    need_mask = n_pad != N
    tc1 = _col_tile(hid_p)
    tc2 = _col_tile(out_p)

    f32, bf16 = jnp.float32, jnp.bfloat16

    # Rows padded to the row tile; K (in_dim) left unpadded.  Cast to bf16
    # before padding so the wrapper copy is half-size.
    hp = jnp.pad(h.astype(bf16), ((0, n_pad - N), (0, 0)))
    w1p = _pad2d(w1.astype(bf16), in_dim, hid_p)
    w2p = _pad2d(w2.astype(bf16), hid_p, out_p)
    b1p = _pad2d(b1.astype(f32), 1, hid_p)
    g1p = _pad2d(g1.astype(f32), 1, hid_p)
    be1p = _pad2d(be1.astype(f32), 1, hid_p)
    b2p = _pad2d(b2.astype(f32), 1, out_p)
    g2p = _pad2d(g2.astype(f32), 1, out_p)
    be2p = _pad2d(be2.astype(f32), 1, out_p)

    cp_reduce = pltpu.CompilerParams(
        dimension_semantics=("parallel", "arbitrary"),
        vmem_limit_bytes=VMEM_LIMIT)
    cp_par = pltpu.CompilerParams(
        dimension_semantics=("parallel", "parallel"),
        vmem_limit_bytes=VMEM_LIMIT)

    # ---- pass 1: z1 (bf16) + BN1 stats ----
    z1, st1 = pl.pallas_call(
        functools.partial(_linear_stats_kernel, n_valid=N, tile_rows=tr,
                          need_mask=need_mask),
        grid=(hid_p // tc1, n_rows),
        in_specs=[
            pl.BlockSpec((tr, in_dim), lambda j, i: (i, 0)),
            pl.BlockSpec((in_dim, tc1), lambda j, i: (0, j)),
            pl.BlockSpec((1, tc1), lambda j, i: (0, j)),
        ],
        out_specs=(
            pl.BlockSpec((tr, tc1), lambda j, i: (i, j)),
            pl.BlockSpec((2, tc1), lambda j, i: (0, j)),
        ),
        out_shape=(jax.ShapeDtypeStruct((n_pad, hid_p), bf16),
                   jax.ShapeDtypeStruct((2, hid_p), f32)),
        compiler_params=cp_reduce,
    )(hp, w1p, b1p)

    # ---- pass 2: BN1 + ReLU + Linear2 -> z2 (bf16) + BN2 stats ----
    z2, st2 = pl.pallas_call(
        functools.partial(_bn_relu_linear_stats_kernel, n_valid=N,
                          tile_rows=tr, need_mask=need_mask),
        grid=(out_p // tc2, n_rows),
        in_specs=[
            pl.BlockSpec((tr, hid_p), lambda j, i: (i, 0)),
            pl.BlockSpec((2, hid_p), lambda j, i: (0, 0)),
            pl.BlockSpec((1, hid_p), lambda j, i: (0, 0)),
            pl.BlockSpec((1, hid_p), lambda j, i: (0, 0)),
            pl.BlockSpec((hid_p, tc2), lambda j, i: (0, j)),
            pl.BlockSpec((1, tc2), lambda j, i: (0, j)),
        ],
        out_specs=(
            pl.BlockSpec((tr, tc2), lambda j, i: (i, j)),
            pl.BlockSpec((2, tc2), lambda j, i: (0, j)),
        ),
        out_shape=(jax.ShapeDtypeStruct((n_pad, out_p), bf16),
                   jax.ShapeDtypeStruct((2, out_p), f32)),
        compiler_params=cp_reduce,
    )(z1, st1, g1p, be1p, w2p, b2p)

    # ---- pass 3: y = relu(BN2(z2)) ----
    y = pl.pallas_call(
        functools.partial(_bn_relu_kernel, n_valid=N),
        grid=(out_p // tc2, n_rows),
        in_specs=[
            pl.BlockSpec((tr, tc2), lambda j, i: (i, j)),
            pl.BlockSpec((2, tc2), lambda j, i: (0, j)),
            pl.BlockSpec((1, tc2), lambda j, i: (0, j)),
            pl.BlockSpec((1, tc2), lambda j, i: (0, j)),
        ],
        out_specs=pl.BlockSpec((tr, tc2), lambda j, i: (i, j)),
        out_shape=jax.ShapeDtypeStruct((n_pad, out_p), h.dtype),
        compiler_params=cp_par,
    )(z2, st2, g2p, be2p)

    return y[:N, :out_dim]


# ---------------------------------------------------------------------------
# Pure-JAX references
# ---------------------------------------------------------------------------
def _bn_ref(x, g, b):
    mu = jnp.mean(x, axis=0, keepdims=True)
    var = jnp.mean((x - mu) ** 2, axis=0, keepdims=True)
    return (x - mu) * jax.lax.rsqrt(var + EPS) * g + b


def reference_f32(h, params):
    w1, b1, g1, be1, w2, b2, g2, be2 = params
    h1 = jax.nn.relu(_bn_ref(h @ w1 + b1, g1, be1))
    z2 = h1 @ w2 + b2
    return jax.nn.relu(_bn_ref(z2, g2, be2))


def reference_bf16_matmul(h, params):
    """Same math as the kernel's dtype choice: bf16 matmul inputs, f32 rest."""
    w1, b1, g1, be1, w2, b2, g2, be2 = params
    bf = jnp.bfloat16
    z1 = jnp.dot(h.astype(bf), w1.astype(bf),
                 preferred_element_type=jnp.float32) + b1
    h1 = jax.nn.relu(_bn_ref(z1, g1, be1))
    z2 = jnp.dot(h1.astype(bf), w2.astype(bf),
                 preferred_element_type=jnp.float32) + b2
    return jax.nn.relu(_bn_ref(z2, g2, be2))


if __name__ == "__main__":
    N, input_dim, hidden_dim, output_dim = 64, 32, 64, 32

    key = jax.random.PRNGKey(0)
    k_h, k_w1, k_b1, k_w2, k_b2, k_g1, k_be1, k_g2, k_be2 = jax.random.split(key, 9)

    h = jax.random.normal(k_h, (N, input_dim), dtype=jnp.float32)

    def unif(k, shape, bound):
        return jax.random.uniform(k, shape, jnp.float32, -bound, bound)

    w1 = unif(k_w1, (input_dim, hidden_dim), 1.0 / (input_dim ** 0.5))
    b1 = unif(k_b1, (1, hidden_dim), 1.0 / (input_dim ** 0.5))
    g1 = 1.0 + 0.1 * jax.random.normal(k_g1, (1, hidden_dim), jnp.float32)
    be1 = 0.1 * jax.random.normal(k_be1, (1, hidden_dim), jnp.float32)

    w2 = unif(k_w2, (hidden_dim, output_dim), 1.0 / (hidden_dim ** 0.5))
    b2 = unif(k_b2, (1, output_dim), 1.0 / (hidden_dim ** 0.5))
    g2 = 1.0 + 0.1 * jax.random.normal(k_g2, (1, output_dim), jnp.float32)
    be2 = 0.1 * jax.random.normal(k_be2, (1, output_dim), jnp.float32)

    params = (w1, b1, g1, be1, w2, b2, g2, be2)

    out = jax.block_until_ready(apply_node_func(h, params))
    assert out.shape == (N, output_dim)

    ref_same_dtype = reference_bf16_matmul(h, params)
    ref_f32 = reference_f32(h, params)

    assert jnp.allclose(out, ref_same_dtype, atol=2e-2, rtol=2e-2), \
        "mismatch vs bf16-matmul reference"
    assert jnp.allclose(out, ref_f32, atol=1e-1, rtol=1e-1), \
        "mismatch vs f32 reference (sanity)"

    print("KERNEL_OK")
</pallas_src>

<mosaic_0001>
module attributes {stable_mosaic.version = 11 : i64} {
  func.func @_linear_stats_kernel(%arg0: i32, %arg1: i32, %arg2: memref<64x32xbf16, #tpu.memory_space<vmem>>, %arg3: memref<32x128xbf16, #tpu.memory_space<vmem>>, %arg4: memref<1x128xf32, #tpu.memory_space<vmem>>, %arg5: memref<64x128xbf16, #tpu.memory_space<vmem>>, %arg6: memref<2x128xf32, #tpu.memory_space<vmem>>) attributes {dimension_semantics = [#tpu.dimension_semantics<parallel>, #tpu.dimension_semantics<arbitrary>], iteration_bounds = array<i64: 1, 1>, scalar_prefetch = 0 : i64, scratch_operands = 0 : i64, tpu.core_type = #tpu.core_type<tc>, window_params = [{transform_indices = @transform_0, window_bounds = array<i64: 64, 32>}, {transform_indices = @transform_1, window_bounds = array<i64: 32, 128>}, {transform_indices = @transform_2, window_bounds = array<i64: 1, 128>}, {transform_indices = @transform_3, window_bounds = array<i64: 64, 128>}, {transform_indices = @transform_4, window_bounds = array<i64: 2, 128>}]} {
    %c0_i32 = arith.constant 0 : i32
    %0 = arith.cmpi eq, %arg1, %c0_i32 : i32
    %1 = arith.extui %0 : i1 to i32
    %c0_i32_0 = arith.constant 0 : i32
    %2 = arith.cmpi ne, %1, %c0_i32_0 : i32
    scf.if %2 {
      %cst_14 = arith.constant 0.000000e+00 : f32
      %21 = vector.broadcast %cst_14 : f32 to vector<2x128xf32>
      %c0_15 = arith.constant 0 : index
      %c0_16 = arith.constant 0 : index
      %22 = vector.load %arg6[%c0_15, %c0_16] : memref<2x128xf32, #tpu.memory_space<vmem>>, vector<2x128xf32>
      tpu.vector_store %arg6[%c0_15, %c0_16], %21 {strides = array<i32>} : memref<2x128xf32, #tpu.memory_space<vmem>>, vector<2x128xf32>,
    } else {
    }
    %c0 = arith.constant 0 : index
    %c0_1 = arith.constant 0 : index
    %3 = vector.load %arg2[%c0, %c0_1] : memref<64x32xbf16, #tpu.memory_space<vmem>>, vector<64x32xbf16>
    %c0_2 = arith.constant 0 : index
    %c0_3 = arith.constant 0 : index
    %4 = vector.load %arg3[%c0_2, %c0_3] : memref<32x128xbf16, #tpu.memory_space<vmem>>, vector<32x128xbf16>
    %cst = arith.constant dense<0.000000e+00> : vector<64x128xf32>
    %5 = tpu.matmul %3, %4, %cst {dimension_numbers = #tpu.dot_dimension_numbers<[1], [0], [0], [1], [0, 0, 1, 1], [], []>} : vector<64x32xbf16>, vector<32x128xbf16>, vector<64x128xf32> -> vector<64x128xf32>
    %c0_4 = arith.constant 0 : index
    %c0_5 = arith.constant 0 : index
    %6 = vector.load %arg4[%c0_4, %c0_5] : memref<1x128xf32, #tpu.memory_space<vmem>>, vector<1x128xf32>
    %7 = vector.broadcast %6 : vector<1x128xf32> to vector<64x128xf32>
    %8 = arith.addf %5, %7 : vector<64x128xf32>
    %9 = arith.truncf %8 : vector<64x128xf32> to vector<64x128xbf16>
    %c0_6 = arith.constant 0 : index
    %c0_7 = arith.constant 0 : index
    %10 = vector.load %arg5[%c0_6, %c0_7] : memref<64x128xbf16, #tpu.memory_space<vmem>>, vector<64x128xbf16>
    tpu.vector_store %arg5[%c0_6, %c0_7], %9 {strides = array<i32>} : memref<64x128xbf16, #tpu.memory_space<vmem>>, vector<64x128xbf16>,
    %11 = arith.extf %9 : vector<64x128xbf16> to vector<64x128xf32>
    %cst_8 = arith.constant dense<0.000000e+00> : vector<128xf32>
    %12 = vector.multi_reduction <add>, %11, %cst_8 [0] : vector<64x128xf32> to vector<128xf32>
    %13 = vector.shape_cast %12 : vector<128xf32> to vector<1x128xf32>
    %14 = arith.mulf %11, %11 : vector<64x128xf32>
    %cst_9 = arith.constant dense<0.000000e+00> : vector<128xf32>
    %15 = vector.multi_reduction <add>, %14, %cst_9 [0] : vector<64x128xf32> to vector<128xf32>
    %16 = vector.shape_cast %15 : vector<128xf32> to vector<1x128xf32>
    %c0_10 = arith.constant 0 : index
    %c0_11 = arith.constant 0 : index
    %17 = vector.load %arg6[%c0_10, %c0_11] : memref<2x128xf32, #tpu.memory_space<vmem>>, vector<2x128xf32>
    %18 = tpu.concatenate %13, %16 in 0 : vector<1x128xf32>, vector<1x128xf32> -> vector<2x128xf32>
    %19 = arith.addf %17, %18 : vector<2x128xf32>
    %c0_12 = arith.constant 0 : index
    %c0_13 = arith.constant 0 : index
    %20 = vector.load %arg6[%c0_12, %c0_13] : memref<2x128xf32, #tpu.memory_space<vmem>>, vector<2x128xf32>
    tpu.vector_store %arg6[%c0_12, %c0_13], %19 {strides = array<i32>} : memref<2x128xf32, #tpu.memory_space<vmem>>, vector<2x128xf32>,
    return
  }
  func.func @transform_0(%arg0: i32, %arg1: i32) -> (i32, i32) {
    %c0_i32 = arith.constant 0 : i32
    %c0_i32_0 = arith.constant 0 : i32
    return %arg1, %c0_i32 : i32, i32
  }
  func.func @transform_1(%arg0: i32, %arg1: i32) -> (i32, i32) {
    %c0_i32 = arith.constant 0 : i32
    %c0_i32_0 = arith.constant 0 : i32
    return %c0_i32, %arg0 : i32, i32
  }
  func.func @transform_2(%arg0: i32, %arg1: i32) -> (i32, i32) {
    %c0_i32 = arith.constant 0 : i32
    %c0_i32_0 = arith.constant 0 : i32
    return %c0_i32, %arg0 : i32, i32
  }
  func.func @transform_3(%arg0: i32, %arg1: i32) -> (i32, i32) {
    %c0_i32 = arith.constant 0 : i32
    return %arg1, %arg0 : i32, i32
  }
  func.func @transform_4(%arg0: i32, %arg1: i32) -> (i32, i32) {
    %c0_i32 = arith.constant 0 : i32
    %c0_i32_0 = arith.constant 0 : i32
    return %c0_i32, %arg0 : i32, i32
  }
}

</mosaic_0001>

<llo_original>
// kernel: tpu_custom_call.1
$region0: #{tpu_custom_call.1}
  #allocation0 [shape = 'u32[]', space=smem, size = 0x4, offset = 0x4, fixed_abs, tag = 'smem constant byte address 0x4 - core index']
  #allocation1 [shape = 'u32[144,128]{1,0:T(1,128)}', space=vmem, size = 0x12000, scoped, tag = 'internal scratch']
  %s0 = inlined_call_operand.vmem [shape: bf16[64,32], index: 0, kind: input, shape index: {}]
  %s1 = inlined_call_operand.vmem [shape: bf16[32,128], index: 1, kind: input, shape index: {}]
  %s2 = inlined_call_operand.vmem [shape: f32[1,128], index: 2, kind: input, shape index: {}]
  %s3 = inlined_call_operand.hbm [shape: bf16[64,128], index: 3, kind: output, shape index: {0}]
  %s4 = inlined_call_operand.hbm [shape: f32[2,128], index: 4, kind: output, shape index: {1}]
  %5 = xla_tuple %s3, %s4
  %s6 = sld [smem:[#allocation0]]
  $region34: #{tpu_custom_call.1} parent=0
    _
  %s8 = ssub.s32 1, %s6
  %s9 = scalar_select 0, %s8, %s6
  $region1: #{tpu_custom_call.1} parent=0
    #allocation2 [shape = 'u8[16384]{0}', space=vmem, size = 0x4000, scoped, tag = 'output window, operand 0, single buffered']
    #allocation3 [shape = 's32[1]{0}', space=sflag, size = 0x4, scoped, tag = 'scoped memory for tpu_custom_call.1']
    #allocation4 [shape = 'u8[1024]{0}', space=vmem, size = 0x400, scoped, tag = 'output window, operand 1, single buffered']
    #allocation5 [shape = 's32[1]{0}', space=sflag, size = 0x4, scoped, tag = 'scoped memory for tpu_custom_call.1']
    %10 = vsyncpa [#allocation3], 0
    %11 = vsyncpa [#allocation5], 0
    // Predicated region
    $region2: #{tpu_custom_call.1} parent=1 // pred_check
      _
    $region3: #{tpu_custom_call.1} parent=1 // pred_check_branch
      %13 = sbr.rel (0) target = $region5
    $region4: #{tpu_custom_call.1} parent=1 // pred_region
      _
    $region5: #{tpu_custom_call.1} parent=1 // pred_fallthru
      _
    // Predicated region
    $region6: #{tpu_custom_call.1} parent=1 // pred_check
      _
    $region7: #{tpu_custom_call.1} parent=1 // pred_check_branch
      %15 = sbr.rel (0) target = $region9
    $region8: #{tpu_custom_call.1} parent=1 // pred_region
      _
    $region9: #{tpu_custom_call.1} parent=1 // pred_fallthru
      _
    // Predicated region
    $region10: #{tpu_custom_call.1} parent=1 // pred_check
      _
    $region11: #{tpu_custom_call.1} parent=1 // pred_check_branch
      %17 = sbr.rel (0) target = $region13
    $region12: #{tpu_custom_call.1} parent=1 // pred_region
      _
    $region13: #{tpu_custom_call.1} parent=1 // pred_fallthru
      _
    %p19 = scmp.eq.s32.totalorder 0, 0
    // Predicated region
    $region14: #{tpu_custom_call.1} parent=1 // pred_check
      %p20 = pneg %p19
    $region15: #{tpu_custom_call.1} parent=1 // pred_check_branch
      %22 = sbr.rel (%p20) target = $region17
    $region16: #{tpu_custom_call.1} parent=1 // pred_region
      %23 = vst [vmem:[#allocation4] sm:$0x3] 0.0
    $region17: #{tpu_custom_call.1} parent=1 // pred_fallthru
      _
    %v24 = vld [vmem:[%s0] sm:$0xf]
    %v25 = vld [vmem:[%s0 + $0x4] sm:$0xf]
    %v26 = vld [vmem:[%s0 + $0x8] sm:$0xf]
    %v27 = vld [vmem:[%s0 + $0xc] sm:$0xf]
    %v28 = vld [vmem:[%s0 + $0x10] sm:$0xf]
    %v29 = vld [vmem:[%s0 + $0x14] sm:$0xf]
    %v30 = vld [vmem:[%s0 + $0x18] sm:$0xf]
    %v31 = vld [vmem:[%s0 + $0x1c] sm:$0xf]
    %v32 = vld [vmem:[%s1] sm:$0xf]
    %v33 = vld [vmem:[%s1 + $0x4] sm:$0xf]
    %v34 = vld [vmem:[%s1 + $0x8] sm:$0xf]
    %v35 = vld [vmem:[%s1 + $0xc] sm:$0xf]
    %v36 = vld [vmem:[%s2] sm:$0x1]
    %v38 = vlaneseq
    %v39 = vshrl.u32 %v38, 7
    %v40 = vsub.s32 0, %v39
    %v41 = vrot.slane %v36, %v40
    %v51 = vunpack.c.l.b16 %v24
    %v52 = vunpack.c.l.b16 %v25
    %v53 = vunpack.c.l.b16 %v26
    %v54 = vunpack.c.l.b16 %v27
    %v55 = vunpack.c.l.b16 %v28
    %v56 = vunpack.c.l.b16 %v29
    %v57 = vunpack.c.l.b16 %v30
    %v58 = vunpack.c.l.b16 %v31
    %v59 = vpack.c.b16 %v52, %v51
    %v60 = vpack.c.b16 %v54, %v53
    %v61 = vpack.c.b16 %v56, %v55
    %v62 = vpack.c.b16 %v58, %v57
    %v67 = vunpack.c.l.b16 %v32
    %v68 = vunpack.c.l.b16 %v33
    %v69 = vunpack.c.l.b16 %v34
    %v70 = vunpack.c.l.b16 %v35
    %v71 = vpack.c.b16 %v68, %v67
    %v72 = vpack.c.b16 %v70, %v69
    %vm75 = vcmask 261120
    %v77 = vsel %vm75, %v59, 0
    %v80 = vsel %vm75, %v60, 0
    %v83 = vsel %vm75, %v61, 0
    %v86 = vsel %vm75, %v62, 0
    %88 = vmatprep.subr.bf16.mxu0 0
    %89 = vmatpush1.bf16.msra.mxu0 %v71
    %90 = vmatprep.subr.bf16.mxu0 0
    %91 = vmatpush1.bf16.msra.mxu0 %v72
    %92 = vmatprep.subr.bf16.mxu0 0
    %93 = vmatpush1.bf16.msra.mxu0 0
    %94 = vmatprep.subr.bf16.mxu0 0
    %95 = vmatpush1.bf16.msra.mxu0 0
    %96 = vmatprep.subr.bf16.mxu0 0
    %97 = vmatpush1.bf16.msra.mxu0 0
    %98 = vmatprep.subr.bf16.mxu0 0
    %99 = vmatpush1.bf16.msra.mxu0 0
    %100 = vmatprep.subr.bf16.mxu0 0
    %101 = vmatpush1.bf16.msra.mxu0 0
    %102 = vmatprep.subr.bf16.mxu0 0
    %103 = vmatpush1.bf16.msra.mxu0 0
    %104 = vmatprep.subr.bf16.mxu0 0
    %105 = vmatpush1.bf16.msra.mxu0 0
    %106 = vmatprep.subr.bf16.mxu0 0
    %107 = vmatpush1.bf16.msra.mxu0 0
    %108 = vmatprep.subr.bf16.mxu0 0
    %109 = vmatpush1.bf16.msra.mxu0 0
    %110 = vmatprep.subr.bf16.mxu0 0
    %111 = vmatpush1.bf16.msra.mxu0 0
    %112 = vmatprep.subr.bf16.mxu0 0
    %113 = vmatpush1.bf16.msra.mxu0 0
    %114 = vmatprep.subr.bf16.mxu0 0
    %115 = vmatpush1.bf16.msra.mxu0 0
    %116 = vmatprep.subr.bf16.mxu0 0
    %117 = vmatpush1.bf16.msra.mxu0 0
    %118 = vmatprep.subr.bf16.mxu0 0
    %119 = vmatpush1.bf16.msra.mxu0 0
    %120 = vmatprep.mubr.bf16.mxu0 0
    %121 = vmatmul.mubr.bf16.gmra.mrb[0].mxu0 %v77
    %v122 = vpop.f32.mrb[0].mxu0
    %v123 = vadd.f32 %v41, %v122
    %v124 = vpop.f32.mrb[0].mxu0
    %v125 = vpop.f32.mrb[0].mxu0
    %v126 = vadd.f32 %v41, %v125
    %v127 = vpop.f32.mrb[0].mxu0
    %128 = vmatprep.mubr.bf16.mxu0 0
    %129 = vmatmul.mubr.bf16.gmra.mrb[0].mxu0 %v80
    %v130 = vpop.f32.mrb[0].mxu0
    %v131 = vadd.f32 %v41, %v130
    %v132 = vpop.f32.mrb[0].mxu0
    %v133 = vpop.f32.mrb[0].mxu0
    %v134 = vadd.f32 %v41, %v133
    %v135 = vpop.f32.mrb[0].mxu0
    %136 = vmatprep.mubr.bf16.mxu0 0
    %137 = vmatmul.mubr.bf16.gmra.mrb[0].mxu0 %v83
    %v138 = vpop.f32.mrb[0].mxu0
    %v139 = vadd.f32 %v41, %v138
    %v140 = vpop.f32.mrb[0].mxu0
    %v141 = vpop.f32.mrb[0].mxu0
    %v142 = vadd.f32 %v41, %v141
    %v143 = vpop.f32.mrb[0].mxu0
    %144 = vmatprep.mubr.bf16.mxu0 0
    %145 = vmatmul.mubr.bf16.gmra.mrb[0].mxu0 %v86
    %v146 = vpop.f32.mrb[0].mxu0
    %v147 = vadd.f32 %v41, %v146
    %v148 = vpop.f32.mrb[0].mxu0
    %v149 = vpop.f32.mrb[0].mxu0
    %v150 = vadd.f32 %v41, %v149
    %v151 = vpop.f32.mrb[0].mxu0
    %152 = vdwg.mxu0
    %v153 = vpack.c.bf16 %v126, %v123
    %v154 = vpack.c.bf16 %v134, %v131
    %v155 = vpack.c.bf16 %v142, %v139
    %v156 = vpack.c.bf16 %v150, %v147
    %v161 = vunpack.c.l.b16 %v153
    %v162 = vunpack.c.h.b16 %v153
    %v163 = vunpack.c.l.b16 %v154
    %v164 = vunpack.c.h.b16 %v154
    %v165 = vunpack.c.l.b16 %v155
    %v166 = vunpack.c.h.b16 %v155
    %v167 = vunpack.c.l.b16 %v156
    %v168 = vunpack.c.h.b16 %v156
    %v169 = vpack.c.b16 %v161, %v161
    %v170 = vpack.c.b16 %v162, %v162
    %v171 = vpack.c.b16 %v163, %v163
    %v172 = vpack.c.b16 %v164, %v164
    %v173 = vpack.c.b16 %v165, %v165
    %v174 = vpack.c.b16 %v166, %v166
    %v175 = vpack.c.b16 %v167, %v167
    %v176 = vpack.c.b16 %v168, %v168
    %185 = vst [vmem:[#allocation2] sm:$0xf] %v169
    %186 = vst [vmem:[#allocation2 + $0x4] sm:$0xf] %v170
    %187 = vst [vmem:[#allocation2 + $0x8] sm:$0xf] %v171
    %188 = vst [vmem:[#allocation2 + $0xc] sm:$0xf] %v172
    %189 = vst [vmem:[#allocation2 + $0x10] sm:$0xf] %v173
    %190 = vst [vmem:[#allocation2 + $0x14] sm:$0xf] %v174
    %191 = vst [vmem:[#allocation2 + $0x18] sm:$0xf] %v175
    %192 = vst [vmem:[#allocation2 + $0x1c] sm:$0xf] %v176
    %v193 = vunpack.c.l.bf16 %v153
    %v194 = vunpack.c.h.bf16 %v153
    %v195 = vunpack.c.l.bf16 %v154
    %v196 = vunpack.c.h.bf16 %v154
    %v197 = vunpack.c.l.bf16 %v155
    %v198 = vunpack.c.h.bf16 %v155
    %v199 = vunpack.c.l.bf16 %v156
    %v200 = vunpack.c.h.bf16 %v156
    %v201 = vadd.f32 %v193, %v194
    %v202 = vadd.f32 %v201, %v195
    %v203 = vadd.f32 %v202, %v196
    %v204 = vadd.f32 %v203, %v197
    %v205 = vadd.f32 %v204, %v198
    %v206 = vadd.f32 %v205, %v199
    %v207 = vadd.f32 %v206, %v200
    %v208 = vrot.slane %v207, 4
    %v209 = vadd.f32 %v207, %v208
    %v210 = vrot.slane %v209, 2
    %v211 = vadd.f32 %v209, %v210
    %v212 = vrot.slane %v211, 1
    %v213 = vadd.f32 %v211, %v212
    %v214 = vmul.f32 %v193, %v193
    %v215 = vmul.f32 %v194, %v194
    %v216 = vmul.f32 %v195, %v195
    %v217 = vmul.f32 %v196, %v196
    %v218 = vmul.f32 %v197, %v197
    %v219 = vmul.f32 %v198, %v198
    %v220 = vmul.f32 %v199, %v199
    %v221 = vmul.f32 %v200, %v200
    %v222 = vadd.f32 %v214, %v215
    %v223 = vadd.f32 %v222, %v216
    %v224 = vadd.f32 %v223, %v217
    %v225 = vadd.f32 %v224, %v218
    %v226 = vadd.f32 %v225, %v219
    %v227 = vadd.f32 %v226, %v220
    %v228 = vadd.f32 %v227, %v221
    %v229 = vrot.slane %v228, 4
    %v230 = vadd.f32 %v228, %v229
    %v231 = vrot.slane %v230, 2
    %v232 = vadd.f32 %v230, %v231
    %v233 = vrot.slane %v232, 1
    %v234 = vadd.f32 %v232, %v233
    %v235 = vld [vmem:[#allocation4] sm:$0x3]
    %vm236 = vcmask 1040384
    %v237 = vsel %vm236, %v213, %v234
    %v238 = vadd.f32 %v235, %v237
    %239 = vst [vmem:[#allocation4] sm:$0x3] %v238
    // Predicated region
    $region18: #{tpu_custom_call.1} parent=1 // pred_check
      _
    $region19: #{tpu_custom_call.1} parent=1 // pred_check_branch
      %241 = sbr.rel (0) target = $region21
    $region20: #{tpu_custom_call.1} parent=1 // pred_region
      %s243 = ssub.s32 512, 512
      %244 = vsyncadd [#allocation3], %s243
      %s245 = sshll.u32 [#allocation2], 4
      %s246 = int_to_ptr.vmem [resolvable:$true] %s245
      %251 = dma.vmem_to_hbm [thread:$0]  %s246, 512, %s3, [#allocation3], 64, 64, 4
    $region21: #{tpu_custom_call.1} parent=1 // pred_fallthru
      _
    // Predicated region
    $region22: #{tpu_custom_call.1} parent=1 // pred_check
      _
    $region23: #{tpu_custom_call.1} parent=1 // pred_check_branch
      %253 = sbr.rel (0) target = $region25
    $region24: #{tpu_custom_call.1} parent=1 // pred_region
      %s255 = ssub.s32 32, 32
      %256 = vsyncadd [#allocation5], %s255
      %s258 = sshll.u32 [#allocation4], 4
      %s259 = int_to_ptr.vmem [resolvable:$true] %s258
      %261 = dma.vmem_to_hbm [thread:$0]  %s259, 32, %s4, [#allocation5]
    $region25: #{tpu_custom_call.1} parent=1 // pred_fallthru
      _
    // Predicated region
    $region26: #{tpu_custom_call.1} parent=1 // pred_check
      _
    $region27: #{tpu_custom_call.1} parent=1 // pred_check_branch
      %263 = sbr.rel (0) target = $region29
    $region28: #{tpu_custom_call.1} parent=1 // pred_region
      %264 = dma.done [#allocation3], 512
    $region29: #{tpu_custom_call.1} parent=1 // pred_fallthru
      _
    // Predicated region
    $region30: #{tpu_custom_call.1} parent=1 // pred_check
      _
    $region31: #{tpu_custom_call.1} parent=1 // pred_check_branch
      %266 = sbr.rel (0) target = $region33
    $region32: #{tpu_custom_call.1} parent=1 // pred_region
      %267 = dma.done [#allocation5], 32
    $region33: #{tpu_custom_call.1} parent=1 // pred_fallthru
      _
    %268 = vsyncpa [#allocation3], 1
    %269 = vsyncpa [#allocation5], 1

</llo_original>
